<compile_context>
chip_gen: v7x
topology: tpu7x:2x2x1
jax: 0.10.0
libtpu: 0.0.40
codegen_flags: <defaults>
</compile_context>

<pallas_src>
import functools

import jax
import jax.numpy as jnp
from jax import lax
from jax.experimental import pallas as pl
from jax.experimental.pallas import tpu as pltpu


def _attention_kernel(x_ref, w_ref, sb_ref, out_ref, num_acc, den_acc,
                      *, seq_len, seq_tile, needs_mask):
    # x_ref  : (TB, TS, F)  input tile (native dtype)
    # w_ref  : (1, F)       linear weight (f32)
    # sb_ref : (1, TS)      seq bias tile (Linear bias already folded in, f32)
    # out_ref: (TB, F)      output tile
    # num_acc: (TB, F) f32  numerator accumulator (scratch)
    # den_acc: (TB, 1) f32  denominator accumulator (scratch)
    s = pl.program_id(1)

    @pl.when(s == 0)
    def _init():
        num_acc[...] = jnp.zeros_like(num_acc)
        den_acc[...] = jnp.zeros_like(den_acc)

    x = x_ref[...].astype(jnp.float32)                     # (TB, TS, F)
    w = w_ref[...].astype(jnp.float32)                     # (1, F)

    if needs_mask:
        # Zero out seq rows beyond the real length.  select() guarantees the
        # (unspecified) boundary-block padding cannot inject NaN/Inf.
        pos3 = s * seq_tile + lax.broadcasted_iota(jnp.int32, x.shape, 1)
        x = jnp.where(pos3 < seq_len, x, 0.0)

    # Lane-dense projection: VPU multiply + lane-reduce over F -> (TB, TS).
    scores = jnp.sum(x * w.reshape(1, 1, -1), axis=-1)     # (TB, TS)
    scores = scores + sb_ref[...]                          # (1, TS) broadcast

    aw = jnp.exp(jnp.tanh(scores))                         # (TB, TS), in [1/e, e]

    if needs_mask:
        pos2 = s * seq_tile + lax.broadcasted_iota(jnp.int32, aw.shape, 1)
        aw = jnp.where(pos2 < seq_len, aw, 0.0)

    den_acc[...] += jnp.sum(aw, axis=-1, keepdims=True)    # (TB, 1)
    num_acc[...] += jnp.sum(aw[:, :, None] * x, axis=1)    # (TB, F)

    @pl.when(s == pl.num_programs(1) - 1)
    def _finalize():
        out_ref[...] = (num_acc[...] / (den_acc[...] + 1e-7)).astype(out_ref.dtype)


def attention_forward(rnn_output, fc_weight, fc_bias, seq_bias_full):
    """
    rnn_output:    (B, S, F)          (native dtype; bf16 or f32)
    fc_weight:     (1, F)    float32  (PyTorch nn.Linear(F, 1).weight)
    fc_bias:       (1,)      float32  (PyTorch nn.Linear(F, 1).bias)
    seq_bias_full: (1, maxlen, 1)     (self.bias parameter)
    """
    B, S, F = rnn_output.shape
    x_dtype = rnn_output.dtype
    itemsize = jnp.dtype(x_dtype).itemsize

    target_bytes = 2 * 1024 * 1024                 # per x block (x2 for double-buffer)
    row_bytes = max(F * itemsize, 1)

    # --- Seq tile: full S when it fits, else the largest multiple of 8 (<=512)
    #     such that an 8-row batch tile stays within the VMEM budget.
    ts_cap = max(8, min(512, ((target_bytes // (8 * row_bytes)) // 8) * 8))
    ts = S if S <= ts_cap else ts_cap
    num_s = pl.cdiv(S, ts)
    needs_mask = (S % ts) != 0

    # --- Batch tile: fill the budget; sublane-aligned unless it spans all of B.
    tb = max(1, target_bytes // (ts * row_bytes))
    if tb >= B:
        tb = B
    else:
        tb = max(8, (tb // 8) * 8)
    num_b = pl.cdiv(B, tb)

    # Fold the Linear bias into the sliced sequence bias (mathematically
    # identical).  Pad it to the grid extent — a tiny 1-D pad that keeps the
    # bias path free of boundary-block garbage.
    sb = (seq_bias_full[0, :S, 0] + fc_bias[0]).astype(jnp.float32)   # (S,)
    s_ext = num_s * ts
    if s_ext != S:
        sb = jnp.pad(sb, (0, s_ext - S))
    sb = sb.reshape(1, s_ext)                                         # (1, S_ext)

    w = fc_weight.reshape(1, F).astype(jnp.float32)                   # (1, F)

    kernel = functools.partial(
        _attention_kernel, seq_len=S, seq_tile=ts, needs_mask=needs_mask)

    out = pl.pallas_call(
        kernel,
        out_shape=jax.ShapeDtypeStruct((B, F), x_dtype),
        grid_spec=pltpu.PrefetchScalarGridSpec(
            num_scalar_prefetch=0,
            grid=(num_b, num_s),
            in_specs=[
                pl.BlockSpec((tb, ts, F), lambda b, s: (b, s, 0)),
                pl.BlockSpec((1, F), lambda b, s: (0, 0)),
                pl.BlockSpec((1, ts), lambda b, s: (0, s)),
            ],
            out_specs=pl.BlockSpec((tb, F), lambda b, s: (b, 0)),
            scratch_shapes=[
                pltpu.VMEM((tb, F), jnp.float32),   # numerator
                pltpu.VMEM((tb, 1), jnp.float32),   # denominator
            ],
        ),
        compiler_params=pltpu.CompilerParams(
            dimension_semantics=("parallel", "arbitrary"),
            vmem_limit_bytes=32 * 1024 * 1024,
        ),
    )(rnn_output, w, sb)

    return out


def reference_forward(rnn_output, fc_weight, fc_bias, seq_bias_full):
    """Pure-JAX reference mirroring the PyTorch forward."""
    S = rnn_output.shape[1]
    x = rnn_output.astype(jnp.float32)
    aw = x @ fc_weight.T + fc_bias                                    # (B, S, 1)
    aw = seq_bias_full[:, :S, :] + aw
    aw = jnp.exp(jnp.tanh(aw))
    aw = aw / (jnp.sum(aw, axis=1, keepdims=True) + 1e-7)
    return jnp.sum(aw * x, axis=1)


if __name__ == "__main__":
    key = jax.random.PRNGKey(0)

    # --- Primary small test, shapes consistent with the module's forward.
    B, S, F, MAXLEN = 2, 8, 32, 70
    k_x, k_w, k_b, k_sb, key = jax.random.split(key, 5)
    rnn_output = jax.random.normal(k_x, (B, S, F), dtype=jnp.float32)
    fc_weight = jax.random.normal(k_w, (1, F), dtype=jnp.float32) * 0.1
    fc_bias = jax.random.normal(k_b, (1,), dtype=jnp.float32) * 0.1
    seq_bias_full = jax.random.normal(k_sb, (1, MAXLEN, 1), dtype=jnp.float32) * 0.1

    out = jax.block_until_ready(
        attention_forward(rnn_output, fc_weight, fc_bias, seq_bias_full))
    ref = reference_forward(rnn_output, fc_weight, fc_bias, seq_bias_full)
    assert out.shape == (B, F)
    assert jnp.allclose(out, ref, atol=1e-5, rtol=1e-5), "mismatch vs reference"

    # --- Second check: non-divisible seq tiling (boundary block + mask path).
    B2, S2, F2, MAXLEN2 = 4, 600, 32, 700
    k_x, k_w, k_b, k_sb, key = jax.random.split(key, 5)
    x2 = jax.random.normal(k_x, (B2, S2, F2), dtype=jnp.float32)
    w2 = jax.random.normal(k_w, (1, F2), dtype=jnp.float32) * 0.1
    b2 = jax.random.normal(k_b, (1,), dtype=jnp.float32) * 0.1
    sb2 = jax.random.normal(k_sb, (1, MAXLEN2, 1), dtype=jnp.float32) * 0.1

    out2 = jax.block_until_ready(attention_forward(x2, w2, b2, sb2))
    ref2 = reference_forward(x2, w2, b2, sb2)
    assert out2.shape == (B2, F2)
    assert jnp.allclose(out2, ref2, atol=1e-4, rtol=1e-4), "mismatch vs reference (seq tiles)"

    # --- Third check: non-divisible batch tiling (OOB output writes dropped).
    B3, S3, F3, MAXLEN3 = 50, 600, 32, 700
    k_x, k_w, k_b, k_sb, key = jax.random.split(key, 5)
    x3 = jax.random.normal(k_x, (B3, S3, F3), dtype=jnp.float32)
    w3 = jax.random.normal(k_w, (1, F3), dtype=jnp.float32) * 0.1
    b3 = jax.random.normal(k_b, (1,), dtype=jnp.float32) * 0.1
    sb3 = jax.random.normal(k_sb, (1, MAXLEN3, 1), dtype=jnp.float32) * 0.1

    out3 = jax.block_until_ready(attention_forward(x3, w3, b3, sb3))
    ref3 = reference_forward(x3, w3, b3, sb3)
    assert out3.shape == (B3, F3)
    assert jnp.allclose(out3, ref3, atol=1e-4, rtol=1e-4), "mismatch vs reference (batch tiles)"

    print("KERNEL_OK")
</pallas_src>

<mosaic_0001>
module attributes {stable_mosaic.version = 11 : i64} {
  func.func @_attention_kernel(%arg0: i32, %arg1: i32, %arg2: memref<2x8x32xf32, #tpu.memory_space<vmem>>, %arg3: memref<1x32xf32, #tpu.memory_space<vmem>>, %arg4: memref<1x8xf32, #tpu.memory_space<vmem>>, %arg5: memref<2x32xf32, #tpu.memory_space<vmem>>, %arg6: memref<2x32xf32, #tpu.memory_space<vmem>>, %arg7: memref<2x1xf32, #tpu.memory_space<vmem>>) attributes {dimension_semantics = [#tpu.dimension_semantics<parallel>, #tpu.dimension_semantics<arbitrary>], iteration_bounds = array<i64: 1, 1>, scalar_prefetch = 0 : i64, scratch_operands = 2 : i64, tpu.core_type = #tpu.core_type<tc>, window_params = [{transform_indices = @transform_0, window_bounds = array<i64: 2, 8, 32>}, {pipeline_mode = #tpu.pipeline_mode<synchronous>, transform_indices = @transform_1, window_bounds = array<i64: 1, 32>}, {transform_indices = @transform_2, window_bounds = array<i64: 1, 8>}, {transform_indices = @transform_3, window_bounds = array<i64: 2, 32>}]} {
    %c0_i32 = arith.constant 0 : i32
    %0 = arith.cmpi eq, %arg1, %c0_i32 : i32
    %1 = arith.extui %0 : i1 to i32
    %c0_i32_0 = arith.constant 0 : i32
    %2 = arith.cmpi ne, %1, %c0_i32_0 : i32
    scf.if %2 {
      %cst_19 = arith.constant 0.000000e+00 : f32
      %29 = vector.broadcast %cst_19 : f32 to vector<2x32xf32>
      %c0_20 = arith.constant 0 : index
      %c0_21 = arith.constant 0 : index
      %30 = vector.load %arg6[%c0_20, %c0_21] : memref<2x32xf32, #tpu.memory_space<vmem>>, vector<2x32xf32>
      tpu.vector_store %arg6[%c0_20, %c0_21], %29 {strides = array<i32>} : memref<2x32xf32, #tpu.memory_space<vmem>>, vector<2x32xf32>,
      %cst_22 = arith.constant 0.000000e+00 : f32
      %31 = vector.broadcast %cst_22 : f32 to vector<2x1xf32>
      %c0_23 = arith.constant 0 : index
      %c0_24 = arith.constant 0 : index
      %32 = vector.load %arg7[%c0_23, %c0_24] : memref<2x1xf32, #tpu.memory_space<vmem>>, vector<2x1xf32>
      tpu.vector_store %arg7[%c0_23, %c0_24], %31 {strides = array<i32>} : memref<2x1xf32, #tpu.memory_space<vmem>>, vector<2x1xf32>,
    } else {
    }
    %c0 = arith.constant 0 : index
    %c0_1 = arith.constant 0 : index
    %c0_2 = arith.constant 0 : index
    %3 = vector.load %arg2[%c0, %c0_1, %c0_2] : memref<2x8x32xf32, #tpu.memory_space<vmem>>, vector<2x8x32xf32>
    %c0_3 = arith.constant 0 : index
    %c0_4 = arith.constant 0 : index
    %4 = vector.load %arg3[%c0_3, %c0_4] : memref<1x32xf32, #tpu.memory_space<vmem>>, vector<1x32xf32>
    %5 = vector.shape_cast %4 : vector<1x32xf32> to vector<1x1x32xf32>
    %6 = vector.broadcast %5 : vector<1x1x32xf32> to vector<2x8x32xf32>
    %7 = arith.mulf %3, %6 : vector<2x8x32xf32>
    %cst = arith.constant dense<0.000000e+00> : vector<2x8xf32>
    %8 = vector.multi_reduction <add>, %7, %cst [2] : vector<2x8x32xf32> to vector<2x8xf32>
    %c0_5 = arith.constant 0 : index
    %c0_6 = arith.constant 0 : index
    %9 = vector.load %arg4[%c0_5, %c0_6] : memref<1x8xf32, #tpu.memory_space<vmem>>, vector<1x8xf32>
    %10 = vector.broadcast %9 : vector<1x8xf32> to vector<2x8xf32>
    %11 = arith.addf %8, %10 : vector<2x8xf32>
    %12 = math.tanh %11 : vector<2x8xf32>
    %13 = math.exp %12 : vector<2x8xf32>
    %c0_7 = arith.constant 0 : index
    %c0_8 = arith.constant 0 : index
    %14 = vector.load %arg7[%c0_7, %c0_8] : memref<2x1xf32, #tpu.memory_space<vmem>>, vector<2x1xf32>
    %cst_9 = arith.constant dense<0.000000e+00> : vector<2xf32>
    %15 = vector.multi_reduction <add>, %13, %cst_9 [1] : vector<2x8xf32> to vector<2xf32>
    %16 = vector.shape_cast %15 : vector<2xf32> to vector<2x1xf32>
    %17 = arith.addf %14, %16 : vector<2x1xf32>
    %c0_10 = arith.constant 0 : index
    %c0_11 = arith.constant 0 : index
    %18 = vector.load %arg7[%c0_10, %c0_11] : memref<2x1xf32, #tpu.memory_space<vmem>>, vector<2x1xf32>
    tpu.vector_store %arg7[%c0_10, %c0_11], %17 {strides = array<i32>} : memref<2x1xf32, #tpu.memory_space<vmem>>, vector<2x1xf32>,
    %c0_12 = arith.constant 0 : index
    %c0_13 = arith.constant 0 : index
    %19 = vector.load %arg6[%c0_12, %c0_13] : memref<2x32xf32, #tpu.memory_space<vmem>>, vector<2x32xf32>
    %20 = vector.shape_cast %13 : vector<2x8xf32> to vector<2x8x1xf32>
    %21 = vector.broadcast %20 : vector<2x8x1xf32> to vector<2x8x32xf32>
    %22 = arith.mulf %21, %3 : vector<2x8x32xf32>
    %cst_14 = arith.constant dense<0.000000e+00> : vector<2x32xf32>
    %23 = vector.multi_reduction <add>, %22, %cst_14 [1] : vector<2x8x32xf32> to vector<2x32xf32>
    %24 = arith.addf %19, %23 : vector<2x32xf32>
    %c0_15 = arith.constant 0 : index
    %c0_16 = arith.constant 0 : index
    %25 = vector.load %arg6[%c0_15, %c0_16] : memref<2x32xf32, #tpu.memory_space<vmem>>, vector<2x32xf32>
    tpu.vector_store %arg6[%c0_15, %c0_16], %24 {strides = array<i32>} : memref<2x32xf32, #tpu.memory_space<vmem>>, vector<2x32xf32>,
    %c0_i32_17 = arith.constant 0 : i32
    %26 = arith.cmpi eq, %arg1, %c0_i32_17 : i32
    %27 = arith.extui %26 : i1 to i32
    %c0_i32_18 = arith.constant 0 : i32
    %28 = arith.cmpi ne, %27, %c0_i32_18 : i32
    scf.if %28 {
      %c0_19 = arith.constant 0 : index
      %c0_20 = arith.constant 0 : index
      %29 = vector.load %arg6[%c0_19, %c0_20] : memref<2x32xf32, #tpu.memory_space<vmem>>, vector<2x32xf32>
      %c0_21 = arith.constant 0 : index
      %c0_22 = arith.constant 0 : index
      %30 = vector.load %arg7[%c0_21, %c0_22] : memref<2x1xf32, #tpu.memory_space<vmem>>, vector<2x1xf32>
      %cst_23 = arith.constant 1.000000e-07 : f32
      %31 = vector.broadcast %cst_23 : f32 to vector<2x1xf32>
      %32 = arith.addf %30, %31 : vector<2x1xf32>
      %33 = vector.broadcast %32 : vector<2x1xf32> to vector<2x32xf32>
      %34 = arith.divf %29, %33 : vector<2x32xf32>
      %c0_24 = arith.constant 0 : index
      %c0_25 = arith.constant 0 : index
      %35 = vector.load %arg5[%c0_24, %c0_25] : memref<2x32xf32, #tpu.memory_space<vmem>>, vector<2x32xf32>
      tpu.vector_store %arg5[%c0_24, %c0_25], %34 {strides = array<i32>} : memref<2x32xf32, #tpu.memory_space<vmem>>, vector<2x32xf32>,
    } else {
    }
    return
  }
  func.func @transform_0(%arg0: i32, %arg1: i32) -> (i32, i32, i32) {
    %c0_i32 = arith.constant 0 : i32
    %c0_i32_0 = arith.constant 0 : i32
    return %arg0, %arg1, %c0_i32 : i32, i32, i32
  }
  func.func @transform_1(%arg0: i32, %arg1: i32) -> (i32, i32) {
    %c0_i32 = arith.constant 0 : i32
    %c0_i32_0 = arith.constant 0 : i32
    %c0_i32_1 = arith.constant 0 : i32
    return %c0_i32, %c0_i32_0 : i32, i32
  }
  func.func @transform_2(%arg0: i32, %arg1: i32) -> (i32, i32) {
    %c0_i32 = arith.constant 0 : i32
    %c0_i32_0 = arith.constant 0 : i32
    return %c0_i32, %arg1 : i32, i32
  }
  func.func @transform_3(%arg0: i32, %arg1: i32) -> (i32, i32) {
    %c0_i32 = arith.constant 0 : i32
    %c0_i32_0 = arith.constant 0 : i32
    return %arg0, %c0_i32 : i32, i32
  }
}

</mosaic_0001>

<llo_original>
// kernel: tpu_custom_call.1
$region0: #{tpu_custom_call.1}
  #allocation0 [shape = 'u32[]', space=smem, size = 0x4, offset = 0x4, fixed_abs, tag = 'smem constant byte address 0x4 - core index']
  #allocation1 [shape = 'u32[144,128]{1,0:T(1,128)}', space=vmem, size = 0x12000, scoped, tag = 'internal scratch']
  #allocation2 [shape = 'f32[2,32]{1,0:T(2,128)}', space=vmem, size = 0x400, scoped, tag = 'scratch operand']
  #allocation3 [shape = 'f32[2,1]{1,0:T(2,128)}', space=vmem, size = 0x400, scoped, tag = 'scratch operand']
  %s0 = inlined_call_operand.hbm [shape: f32[2,8,32], index: 0, kind: input, shape index: {}]
  %s1 = inlined_call_operand.vmem [shape: f32[1,32], index: 1, kind: input, shape index: {}]
  %s2 = inlined_call_operand.vmem [shape: f32[1,8], index: 2, kind: input, shape index: {}]
  %s3 = inlined_call_operand.hbm [shape: f32[2,32], index: 3, kind: output, shape index: {}]
  %s4 = sld [smem:[#allocation0]]
  $region34: #{tpu_custom_call.1} parent=0
    _
  %s6 = ssub.s32 1, %s4
  %s7 = scalar_select 0, %s6, %s4
  $region1: #{tpu_custom_call.1} parent=0
    #allocation4 [shape = 'u8[8192]{0}', space=vmem, size = 0x2000, scoped, tag = 'input window, operand 0, single buffered']
    #allocation5 [shape = 's32[1]{0}', space=sflag, size = 0x4, scoped, tag = 'scoped memory for tpu_custom_call.1']
    #allocation6 [shape = 's32[1]{0}', space=sflag, size = 0x4, scoped, tag = 'scoped memory for tpu_custom_call.1']
    #allocation7 [shape = 'u8[1024]{0}', space=vmem, size = 0x400, scoped, tag = 'output window, operand 0, single buffered']
    %8 = vsyncpa [#allocation5], 0
    %9 = vsyncpa [#allocation6], 0
    // Predicated region
    $region2: #{tpu_custom_call.1} parent=1 // pred_check
      _
    $region3: #{tpu_custom_call.1} parent=1 // pred_check_branch
      %11 = sbr.rel (0) target = $region5
    $region4: #{tpu_custom_call.1} parent=1 // pred_region
      %s13 = ssub.s32 256, 256
      %14 = vsyncadd [#allocation5], %s13
      %s15 = sshll.u32 [#allocation4], 4
      %s16 = int_to_ptr.vmem [resolvable:$true] %s15
      %21 = dma.hbm_to_vmem [thread:$0]  %s0, 256, %s16, [#allocation5], 128, 128, 8
    $region5: #{tpu_custom_call.1} parent=1 // pred_fallthru
      _
    // Predicated region
    $region6: #{tpu_custom_call.1} parent=1 // pred_check
      _
    $region7: #{tpu_custom_call.1} parent=1 // pred_check_branch
      %23 = sbr.rel (0) target = $region9
    $region8: #{tpu_custom_call.1} parent=1 // pred_region
      _
    $region9: #{tpu_custom_call.1} parent=1 // pred_fallthru
      _
    // Predicated region
    $region10: #{tpu_custom_call.1} parent=1 // pred_check
      _
    $region11: #{tpu_custom_call.1} parent=1 // pred_check_branch
      %25 = sbr.rel (0) target = $region13
    $region12: #{tpu_custom_call.1} parent=1 // pred_region
      _
    $region13: #{tpu_custom_call.1} parent=1 // pred_fallthru
      _
    // Predicated region
    $region14: #{tpu_custom_call.1} parent=1 // pred_check
      _
    $region15: #{tpu_custom_call.1} parent=1 // pred_check_branch
      %27 = sbr.rel (0) target = $region17
    $region16: #{tpu_custom_call.1} parent=1 // pred_region
      %28 = dma.done [#allocation5], 256
    $region17: #{tpu_custom_call.1} parent=1 // pred_fallthru
      _
    %p29 = scmp.eq.s32.totalorder 0, 0
    // Predicated region
    $region18: #{tpu_custom_call.1} parent=1 // pred_check
      %p30 = pneg %p29
    $region19: #{tpu_custom_call.1} parent=1 // pred_check_branch
      %32 = sbr.rel (%p30) target = $region21
    $region20: #{tpu_custom_call.1} parent=1 // pred_region
      %vm33 = vcmask 254976
      %34 = vst.msk [vmem:[#allocation2] sm:$0x3] %vm33, 0.0
      %vm35 = vcmask 1024
      %36 = vst.msk [vmem:[#allocation3] sm:$0x3] %vm35, 0.0
    $region21: #{tpu_custom_call.1} parent=1 // pred_fallthru
      _
    %v37 = vld [vmem:[#allocation4] sm:$0xff]
    %v38 = vld [vmem:[#allocation4 + $0x8] sm:$0xff]
    %v39 = vld [vmem:[%s1] sm:$0x1]
    %v41 = vlaneseq
    %v42 = vshrl.u32 %v41, 7
    %v43 = vsub.s32 0, %v42
    %v44 = vrot.slane %v39, %v43
    %v46 = vmul.f32 %v37, %v44
    %v47 = vmul.f32 %v38, %v44
    %vm48 = vcmask 261120
    %v49 = vsel %vm48, %v46, 0.0
    %50 = vadd.xlane.f32.xlu0 %v49
    %v51 = vpop.xlane.xlu0 %50
    %v52 = vsel %vm48, %v47, 0.0
    %53 = vadd.xlane.f32.xlu0 %v52
    %v54 = vpop.xlane.xlu0 %53
    %v55 = vld [vmem:[%s2] sm:$0x1]
    %v57 = vlaneseq
    %v58 = vshrl.u32 %v57, 7
    %v59 = vsub.s32 0, %v58
    %v60 = vrot.slane %v55, %v59
    %62 = vbcast.lane.b32.xlu0 %v60, 256
    %v63 = vpop.permute.xlu0 %62
    %v65 = vadd.f32 %v51, %v63
    %v66 = vadd.f32 %v54, %v63
    %v67 = vtanh.pop %v65
    %v68 = vtanh.pop %v66
    %v69 = vmul.f32 %v67, 1.442695
    %v70 = vpow.pop %v69
    %v71 = vmul.f32 %v68, 1.442695
    %v72 = vpow.pop %v71
    %v73 = vld [vmem:[#allocation3] sm:$0x3]
    %76 = vset.pattern.permute.xlu0 0
    %77 = vperm.xlu0 %76, %v70
    %v78 = vpop.permute.xlu0 %77
    %79 = vset.pattern.permute.xlu0 0
    %80 = vperm.xlu0 %79, %v72
    %v81 = vpop.permute.xlu0 %80
    %v82 = vlaneseq
    %v83 = vand.u32 %v82, 127
    %v84 = vlaneseq
    %v85 = vshrl.u32 %v84, 7
    %v86 = vsub.s32 %v83, %v85
    %v87 = vrot.slane %v78, %v86
    %v88 = vlaneseq
    %v89 = vshrl.u32 %v88, 7
    %v90 = vsub.s32 %v83, %v89
    %v91 = vrot.slane %v81, %v90
    %vm92 = vcmask 1041409
    %v93 = vsel %vm92, %v91, %v87
    %vm95 = vcmask 58368
    %v96 = vsel %vm95, %v93, 0.0
    %97 = vadd.xlane.f32.xlu0 %v96
    %v98 = vpop.xlane.xlu0 %97
    %v99 = vadd.f32 %v73, %v98
    %vm100 = vcmask 1024
    %101 = vst.msk [vmem:[#allocation3] sm:$0x3] %vm100, %v99
    %v102 = vld [vmem:[#allocation2] sm:$0x3]
    %v105 = vmul.f32 %v78, %v37
    %v106 = vmul.f32 %v81, %v38
    %v107 = vsel %vm48, %v105, 0.0
    %v108 = vrot.slane %v107, 4
    %v109 = vadd.f32 %v107, %v108
    %v110 = vrot.slane %v109, 2
    %v111 = vadd.f32 %v109, %v110
    %v112 = vrot.slane %v111, 1
    %v113 = vadd.f32 %v111, %v112
    %v114 = vsel %vm48, %v106, 0.0
    %v115 = vrot.slane %v114, 4
    %v116 = vadd.f32 %v114, %v115
    %v117 = vrot.slane %v116, 2
    %v118 = vadd.f32 %v116, %v117
    %v119 = vrot.slane %v118, 1
    %v120 = vadd.f32 %v118, %v119
    %v123 = vsel %vm92, %v120, %v113
    %v125 = vadd.f32 %v102, %v123
    %vm126 = vcmask 254976
    %127 = vst.msk [vmem:[#allocation2] sm:$0x3] %vm126, %v125
    // Predicated region
    $region22: #{tpu_custom_call.1} parent=1 // pred_check
      %p128 = pneg %p29
    $region23: #{tpu_custom_call.1} parent=1 // pred_check_branch
      %130 = sbr.rel (%p128) target = $region25
    $region24: #{tpu_custom_call.1} parent=1 // pred_region
      %v131 = vld [vmem:[#allocation2] sm:$0x3]
      %v132 = vld [vmem:[#allocation3] sm:$0x3]
      %v133 = vadd.f32 %v132, 1e-07
      %135 = vset.pattern.permute.xlu0 0
      %136 = vperm.xlu0 %135, %v133
      %v137 = vpop.permute.xlu0 %136
      %v139 = vrcp.pop %v137
      %v140 = vmul.f32 %v131, %v139
      %141 = vst.msk [vmem:[#allocation7] sm:$0x3] %vm126, %v140
    $region25: #{tpu_custom_call.1} parent=1 // pred_fallthru
      _
    // Predicated region
    $region26: #{tpu_custom_call.1} parent=1 // pred_check
      _
    $region27: #{tpu_custom_call.1} parent=1 // pred_check_branch
      %143 = sbr.rel (0) target = $region29
    $region28: #{tpu_custom_call.1} parent=1 // pred_region
      %s145 = ssub.s32 32, 32
      %146 = vsyncadd [#allocation6], %s145
      %s148 = sshll.u32 [#allocation7], 4
      %s149 = int_to_ptr.vmem [resolvable:$true] %s148
      %151 = dma.vmem_to_hbm [thread:$0]  %s149, 32, %s3, [#allocation6]
    $region29: #{tpu_custom_call.1} parent=1 // pred_fallthru
      _
    // Predicated region
    $region30: #{tpu_custom_call.1} parent=1 // pred_check
      _
    $region31: #{tpu_custom_call.1} parent=1 // pred_check_branch
      %153 = sbr.rel (0) target = $region33
    $region32: #{tpu_custom_call.1} parent=1 // pred_region
      %154 = dma.done [#allocation6], 32
    $region33: #{tpu_custom_call.1} parent=1 // pred_fallthru
      _
    %155 = vsyncpa [#allocation5], 1
    %156 = vsyncpa [#allocation6], 1

</llo_original>
